<compile_context>
chip_gen: v6e
topology: v6e:2x2x1
jax: 0.10.0
libtpu: 0.0.40
codegen_flags: <defaults>
</compile_context>

<pallas_src>
import jax
import jax.numpy as jnp
from jax import lax
from jax.experimental import pallas as pl
from jax.experimental.pallas import tpu as pltpu

LANE = 128
MAX_BLOCK_ROWS = 1024  # 1024 x 128 x 4 B = 512 KiB per f32 buffer


def _mix32(h):
    """lowbias32 finalizer (Chris Wellons) on uint32 — pure VPU int ops."""
    h = h ^ (h >> 16)
    h = h * jnp.uint32(0x7FEB352D)
    h = h ^ (h >> 15)
    h = h * jnp.uint32(0x846CA68B)
    h = h ^ (h >> 16)
    return h


def _gumbel_noise_kernel(seed_ref, x_ref, o_ref):
    """o = (x + logistic_noise >= 0); logistic_noise == g1 - g2 in distribution."""
    block_rows, lane = x_ref.shape
    x = x_ref[...].astype(jnp.float32)

    # Global per-element counter (stateless -> grid blocks are independent).
    base_row = pl.program_id(0) * block_rows
    row = lax.broadcasted_iota(jnp.int32, (block_rows, lane), 0) + base_row
    col = lax.broadcasted_iota(jnp.int32, (block_rows, lane), 1)
    idx = (row * lane + col).astype(jnp.uint32)

    seed = seed_ref[0].astype(jnp.uint32)
    h = _mix32(idx + seed * jnp.uint32(0x9E3779B1))

    # 23 bits -> uniform in [2^-24, 1 - 2^-24]; both endpoints exact in f32, so
    # both logs are always finite (the reference's eps guard is unnecessary).
    u = ((h >> 9).astype(jnp.float32) + jnp.float32(0.5)) * jnp.float32(1.0 / (1 << 23))
    logistic = jnp.log(u) - jnp.log(1.0 - u)  # ~ Logistic(0, 1) == g1 - g2

    # sigmoid((x + noise)/T) >= 0.5  <=>  x + noise >= 0  (T > 0): sign test only.
    o_ref[...] = (x + logistic >= 0.0).astype(o_ref.dtype)


def gumbel_forward(x, *, seed=0, gumbel_temp=1.0, gumbel_noise=True,
                   training=True, eps=1e-8):
    """Pallas TPU implementation of Gumbel.forward (forward value only)."""
    del eps  # only guards log(0) in the reference; our uniforms are strictly in (0, 1)
    assert gumbel_temp > 0.0  # required for the sigmoid>=0.5 <=> x>=0 identity

    if (not training) or (not gumbel_noise):
        # Eval: (x >= 0).float().  Train w/o noise: sigmoid(x/T) >= 0.5 == x >= 0.
        # Plain XLA compare+cast already runs at HBM bandwidth; no kernel needed.
        return (x >= 0).astype(jnp.float32)

    orig_shape = x.shape
    total = x.size
    flat = x.reshape(-1)  # keep native dtype; kernel upcasts in-register

    # Pad only to a LANE multiple (<= 127 elems); partial row-blocks are masked
    # by Pallas, so no padding to a block multiple (avoids a full HBM copy).
    pad = (-total) % LANE
    if pad:
        flat = jnp.pad(flat, (0, pad))
    rows = (total + pad) // LANE

    # Block shape: full array (allowed for any row count) or a (8,128)-aligned tile.
    block_rows = rows if rows <= MAX_BLOCK_ROWS else MAX_BLOCK_ROWS
    grid = (pl.cdiv(rows, block_rows),)

    x2 = flat.reshape(rows, LANE)
    seed_arr = jnp.asarray([seed], dtype=jnp.int32)

    out2 = pl.pallas_call(
        _gumbel_noise_kernel,
        out_shape=jax.ShapeDtypeStruct((rows, LANE), jnp.float32),
        grid_spec=pltpu.PrefetchScalarGridSpec(
            num_scalar_prefetch=1,
            grid=grid,
            in_specs=[pl.BlockSpec((block_rows, LANE), lambda i, s: (i, 0))],
            out_specs=pl.BlockSpec((block_rows, LANE), lambda i, s: (i, 0)),
        ),
        compiler_params=pltpu.CompilerParams(
            # Blocks are fully independent (stateless hash PRNG) -> megacore OK.
            dimension_semantics=("parallel",),
        ),
    )(seed_arr, x2)

    out = out2.reshape(-1)
    if pad:
        out = out[:total]
    return out.reshape(orig_shape)


if __name__ == "__main__":
    key = jax.random.PRNGKey(0)
    x = jax.random.normal(key, (2, 4, 16, 16), dtype=jnp.float32)  # NCHW

    # training mode with gumbel noise (stochastic hard mask)
    y_train = gumbel_forward(x, seed=0, gumbel_temp=1.0,
                             gumbel_noise=True, training=True)
    jax.block_until_ready(y_train)
    assert y_train.shape == x.shape
    assert bool(jnp.all((y_train == 0.0) | (y_train == 1.0)))
    assert not bool(jnp.any(jnp.isnan(y_train)))

    # extreme logits dominate the bounded logistic noise (|noise| <= ~16.6)
    x_ext = jnp.concatenate([jnp.full((1, 4, 16, 16), 50.0, jnp.float32),
                             jnp.full((1, 4, 16, 16), -50.0, jnp.float32)])
    y_ext = gumbel_forward(x_ext, seed=1)
    jax.block_until_ready(y_ext)
    assert bool(jnp.all(y_ext[0] == 1.0)) and bool(jnp.all(y_ext[1] == 0.0))

    # unaligned shape + bf16 input exercises the small pad and in-kernel upcast
    x_odd = jax.random.normal(jax.random.PRNGKey(1), (2, 3, 7, 5),
                              dtype=jnp.bfloat16)
    y_odd = gumbel_forward(x_odd, seed=3)
    jax.block_until_ready(y_odd)
    assert y_odd.shape == x_odd.shape and y_odd.dtype == jnp.float32
    assert bool(jnp.all((y_odd == 0.0) | (y_odd == 1.0)))

    # multi-block grid with a masked partial trailing block (rows = 1120 > 1024)
    x_mb = jax.random.normal(jax.random.PRNGKey(2), (2, 5, 112, 128),
                             dtype=jnp.float32)
    y_mb = gumbel_forward(x_mb, seed=7)
    jax.block_until_ready(y_mb)
    assert y_mb.shape == x_mb.shape
    assert bool(jnp.all((y_mb == 0.0) | (y_mb == 1.0)))
    assert not bool(jnp.any(jnp.isnan(y_mb)))

    # statistical sanity: zero logits -> P(1) = sigmoid(0) = 0.5
    x_zero = jnp.zeros((4, 4, 32, 32), jnp.float32)
    y_zero = gumbel_forward(x_zero, seed=5)
    jax.block_until_ready(y_zero)
    m = float(jnp.mean(y_zero))
    assert 0.4 < m < 0.6, m

    # training without noise -> deterministic: (x >= 0).float()
    y_nonoise = gumbel_forward(x, gumbel_noise=False, training=True)
    jax.block_until_ready(y_nonoise)
    assert bool(jnp.all(y_nonoise == (x >= 0).astype(jnp.float32)))

    # eval mode -> (x >= 0).float()
    y_eval = gumbel_forward(x, training=False)
    jax.block_until_ready(y_eval)
    assert bool(jnp.all(y_eval == (x >= 0).astype(jnp.float32)))

    print("KERNEL_OK")
</pallas_src>

<mosaic_0001>
module attributes {stable_mosaic.version = 11 : i64} {
  func.func @_gumbel_noise_kernel(%arg0: i32, %arg1: memref<1xi32, #tpu.memory_space<smem>>, %arg2: memref<16x128xf32, #tpu.memory_space<vmem>>, %arg3: memref<16x128xf32, #tpu.memory_space<vmem>>) attributes {dimension_semantics = [#tpu.dimension_semantics<parallel>], iteration_bounds = array<i64: 1>, scalar_prefetch = 1 : i64, scratch_operands = 0 : i64, tpu.core_type = #tpu.core_type<tc>, window_params = [{transform_indices = @transform_0, window_bounds = array<i64: 16, 128>}, {transform_indices = @transform_1, window_bounds = array<i64: 16, 128>}]} {
    %c0 = arith.constant 0 : index
    %c0_0 = arith.constant 0 : index
    %0 = vector.load %arg2[%c0, %c0_0] : memref<16x128xf32, #tpu.memory_space<vmem>>, vector<16x128xf32>
    %c16_i32 = arith.constant 16 : i32
    %1 = arith.muli %arg0, %c16_i32 : i32
    %2 = tpu.iota {dimensions = array<i32: 0>} : vector<16x128xi32>
    %3 = vector.broadcast %1 : i32 to vector<16x128xi32>
    %4 = arith.addi %2, %3 : vector<16x128xi32>
    %5 = tpu.iota {dimensions = array<i32: 1>} : vector<16x128xi32>
    %c128_i32 = arith.constant 128 : i32
    %6 = vector.broadcast %c128_i32 : i32 to vector<16x128xi32>
    %7 = arith.muli %4, %6 : vector<16x128xi32>
    %8 = arith.addi %7, %5 : vector<16x128xi32>
    %c0_1 = arith.constant 0 : index
    %9 = memref.load %arg1[%c0_1] : memref<1xi32, #tpu.memory_space<smem>>
    %c-1640531535_i32 = arith.constant -1640531535 : i32
    %10 = arith.muli %9, %c-1640531535_i32 : i32
    %11 = vector.broadcast %10 : i32 to vector<16x128xi32>
    %12 = arith.addi %8, %11 : vector<16x128xi32>
    %c16_i32_2 = arith.constant 16 : i32
    %13 = vector.broadcast %c16_i32_2 : i32 to vector<16x128xi32>
    %14 = arith.shrui %12, %13 : vector<16x128xi32>
    %15 = arith.xori %12, %14 : vector<16x128xi32>
    %c2146121005_i32 = arith.constant 2146121005 : i32
    %16 = vector.broadcast %c2146121005_i32 : i32 to vector<16x128xi32>
    %17 = arith.muli %15, %16 : vector<16x128xi32>
    %c15_i32 = arith.constant 15 : i32
    %18 = vector.broadcast %c15_i32 : i32 to vector<16x128xi32>
    %19 = arith.shrui %17, %18 : vector<16x128xi32>
    %20 = arith.xori %17, %19 : vector<16x128xi32>
    %c-2073254261_i32 = arith.constant -2073254261 : i32
    %21 = vector.broadcast %c-2073254261_i32 : i32 to vector<16x128xi32>
    %22 = arith.muli %20, %21 : vector<16x128xi32>
    %c16_i32_3 = arith.constant 16 : i32
    %23 = vector.broadcast %c16_i32_3 : i32 to vector<16x128xi32>
    %24 = arith.shrui %22, %23 : vector<16x128xi32>
    %25 = arith.xori %22, %24 : vector<16x128xi32>
    %c9_i32 = arith.constant 9 : i32
    %26 = vector.broadcast %c9_i32 : i32 to vector<16x128xi32>
    %27 = arith.shrui %25, %26 : vector<16x128xi32>
    %28 = arith.uitofp %27 : vector<16x128xi32> to vector<16x128xf32>
    %cst = arith.constant 5.000000e-01 : f32
    %29 = vector.broadcast %cst : f32 to vector<16x128xf32>
    %30 = arith.addf %28, %29 : vector<16x128xf32>
    %cst_4 = arith.constant 1.1920929E-7 : f32
    %31 = vector.broadcast %cst_4 : f32 to vector<16x128xf32>
    %32 = arith.mulf %30, %31 : vector<16x128xf32>
    %33 = math.log %32 : vector<16x128xf32>
    %cst_5 = arith.constant 1.000000e+00 : f32
    %34 = vector.broadcast %cst_5 : f32 to vector<16x128xf32>
    %35 = arith.subf %34, %32 : vector<16x128xf32>
    %36 = math.log %35 : vector<16x128xf32>
    %37 = arith.subf %33, %36 : vector<16x128xf32>
    %38 = arith.addf %0, %37 : vector<16x128xf32>
    %cst_6 = arith.constant 0.000000e+00 : f32
    %39 = vector.broadcast %cst_6 : f32 to vector<16x128xf32>
    %40 = arith.cmpf oge, %38, %39 : vector<16x128xf32>
    %41 = arith.extui %40 : vector<16x128xi1> to vector<16x128xi32>
    %42 = arith.sitofp %41 : vector<16x128xi32> to vector<16x128xf32>
    %c0_7 = arith.constant 0 : index
    %c0_8 = arith.constant 0 : index
    %43 = vector.load %arg3[%c0_7, %c0_8] : memref<16x128xf32, #tpu.memory_space<vmem>>, vector<16x128xf32>
    tpu.vector_store %arg3[%c0_7, %c0_8], %42 {strides = array<i32>} : memref<16x128xf32, #tpu.memory_space<vmem>>, vector<16x128xf32>,
    return
  }
  func.func @transform_0(%arg0: i32, %arg1: memref<1xi32, #tpu.memory_space<smem>>) -> (i32, i32) {
    %c0_i32 = arith.constant 0 : i32
    %c0_i32_0 = arith.constant 0 : i32
    return %arg0, %c0_i32 : i32, i32
  }
  func.func @transform_1(%arg0: i32, %arg1: memref<1xi32, #tpu.memory_space<smem>>) -> (i32, i32) {
    %c0_i32 = arith.constant 0 : i32
    %c0_i32_0 = arith.constant 0 : i32
    return %arg0, %c0_i32 : i32, i32
  }
}

</mosaic_0001>

<llo_original>
// kernel: tpu_custom_call.1
$region0: #{tpu_custom_call.1}
  #allocation0 [shape = 'u32[]', space=smem, size = 0x4, offset = 0x4, fixed_abs, tag = 'smem constant byte address 0x4 - core index']
  #allocation1 [shape = 'u32[144,128]{1,0:T(1,128)}', space=vmem, size = 0x12000, scoped, tag = 'internal scratch']
  #allocation2 [shape = 's32[1]{0}', space=sflag, size = 0x4, scoped, tag = 'scoped memory for tpu_custom_call.1']
  #allocation3 [shape = 's32[1]{0:T(128)S(6)}', space=smem, size = 0x200, scoped, tag = 'prefetched SMEM operand 0']
  %s0 = inlined_call_operand.<no memory space> [shape: s32[1], index: 0, kind: input, shape index: {}]
  %s1 = inlined_call_operand.hbm [shape: f32[16,128], index: 1, kind: input, shape index: {}]
  %s2 = inlined_call_operand.hbm [shape: f32[16,128], index: 2, kind: output, shape index: {}]
  %s3 = sld [smem:[#allocation0]]
  $region18: #{tpu_custom_call.1} parent=0
    _
  %s5 = ssub.s32 1, %s3
  %s6 = scalar_select 0, %s5, %s3
  %7 = sst [smem:[#allocation3]] %s0
  $region1: #{tpu_custom_call.1} parent=0
    #allocation4 [shape = 'u8[8192]{0}', space=vmem, size = 0x2000, scoped, tag = 'input window, operand 1, single buffered']
    #allocation5 [shape = 's32[1]{0}', space=sflag, size = 0x4, scoped, tag = 'scoped memory for tpu_custom_call.1']
    #allocation6 [shape = 's32[1]{0}', space=sflag, size = 0x4, scoped, tag = 'scoped memory for tpu_custom_call.1']
    #allocation7 [shape = 'u8[8192]{0}', space=vmem, size = 0x2000, scoped, tag = 'output window, operand 0, single buffered']
    %8 = vsyncpa [#allocation5], 0
    %9 = vsyncpa [#allocation6], 0
    // Predicated region
    $region2: #{tpu_custom_call.1} parent=1 // pred_check
      _
    $region3: #{tpu_custom_call.1} parent=1 // pred_check_branch
      %11 = sbr.rel (0) target = $region5
    $region4: #{tpu_custom_call.1} parent=1 // pred_region
      %s13 = ssub.s32 256, 256
      %14 = vsyncadd [#allocation5], %s13
      %s15 = sshll.u32 [#allocation4], 4
      %s16 = int_to_ptr.vmem [resolvable:$true] %s15
      %21 = dma.hbm_to_vmem [thread:$0]  %s1, 256, %s16, [#allocation5], 128, 128, 8
    $region5: #{tpu_custom_call.1} parent=1 // pred_fallthru
      _
    // Predicated region
    $region6: #{tpu_custom_call.1} parent=1 // pred_check
      _
    $region7: #{tpu_custom_call.1} parent=1 // pred_check_branch
      %23 = sbr.rel (0) target = $region9
    $region8: #{tpu_custom_call.1} parent=1 // pred_region
      %24 = dma.done [#allocation5], 256
    $region9: #{tpu_custom_call.1} parent=1 // pred_fallthru
      _
    %v25 = vld [vmem:[#allocation4] sm:$0xff]
    %v26 = vld [vmem:[#allocation4 + $0x8] sm:$0xff]
    %s27 = smul.u32 0, 16
    %v28 = vlaneseq
    %v29 = vshrl.u32 %v28, 7
    %v30 = vadd.s32 %v29, 8
    %v31 = vstv %s27
    %v32 = vadd.s32 %v29, %v31
    %v33 = vadd.s32 %v30, %v31
    %v34 = vlaneseq
    %v35 = vand.u32 %v34, 127
    %v36 = vmul.u32 %v32, 128
    %v37 = vmul.u32 %v33, 128
    %v38 = vadd.s32 %v36, %v35
    %v39 = vadd.s32 %v37, %v35
    %s40 = sld [smem:[#allocation3]]
    %s41 = smul.u32 %s40, 2654435761
    %v42 = vstv %s41
    %v43 = vadd.s32 %v38, %v42
    %v44 = vadd.s32 %v39, %v42
    %v45 = vshrl.u32 %v43, 16
    %v46 = vshrl.u32 %v44, 16
    %v47 = vxor.u32 %v43, %v45
    %v48 = vxor.u32 %v44, %v46
    %v49 = vmul.u32 %v47, 2146121005
    %v50 = vmul.u32 %v48, 2146121005
    %v51 = vshrl.u32 %v49, 15
    %v52 = vshrl.u32 %v50, 15
    %v53 = vxor.u32 %v49, %v51
    %v54 = vxor.u32 %v50, %v52
    %v55 = vmul.u32 %v53, 2221713035
    %v56 = vmul.u32 %v54, 2221713035
    %v57 = vshrl.u32 %v55, 16
    %v58 = vshrl.u32 %v56, 16
    %v59 = vxor.u32 %v55, %v57
    %v60 = vxor.u32 %v56, %v58
    %v61 = vshrl.u32 %v59, 9
    %v62 = vshrl.u32 %v60, 9
    %v63 = vshrl.u32 %v61, 16
    %v64 = vand.u32 %v61, 65535
    %v65 = vcvt.s32.f32 %v63
    %v66 = vmul.f32 %v65, 65536.0
    %v67 = vcvt.s32.f32 %v64
    %v68 = vadd.f32 %v66, %v67
    %v69 = vshrl.u32 %v62, 16
    %v70 = vand.u32 %v62, 65535
    %v71 = vcvt.s32.f32 %v69
    %v72 = vmul.f32 %v71, 65536.0
    %v73 = vcvt.s32.f32 %v70
    %v74 = vadd.f32 %v72, %v73
    %v75 = vadd.f32 %v68, 0.5
    %v76 = vadd.f32 %v74, 0.5
    %v77 = vmul.f32 %v75, 1.1920929e-07
    %v78 = vmul.f32 %v76, 1.1920929e-07
    %v79 = vlog2.pop %v77
    %v80 = vmul.f32 %v79, 0.6931472
    %v81 = vlog2.pop %v78
    %v82 = vmul.f32 %v81, 0.6931472
    %v83 = vsub.f32 1.0, %v77
    %v84 = vsub.f32 1.0, %v78
    %v85 = vlog2.pop %v83
    %v86 = vmul.f32 %v85, 0.6931472
    %v87 = vlog2.pop %v84
    %v88 = vmul.f32 %v87, 0.6931472
    %v89 = vsub.f32 %v80, %v86
    %v90 = vsub.f32 %v82, %v88
    %v91 = vadd.f32 %v25, %v89
    %v92 = vadd.f32 %v26, %v90
    %vm93 = vcmp.ge.f32.partialorder %v91, 0.0
    %vm94 = vcmp.ge.f32.partialorder %v92, 0.0
    %v95 = vsel %vm93, 1, 0
    %v96 = vsel %vm94, 1, 0
    %v97 = vcvt.s32.f32 %v95
    %v98 = vcvt.s32.f32 %v96
    %99 = vst [vmem:[#allocation7] sm:$0xff] %v97
    %100 = vst [vmem:[#allocation7 + $0x8] sm:$0xff] %v98
    // Predicated region
    $region10: #{tpu_custom_call.1} parent=1 // pred_check
      _
    $region11: #{tpu_custom_call.1} parent=1 // pred_check_branch
      %102 = sbr.rel (0) target = $region13
    $region12: #{tpu_custom_call.1} parent=1 // pred_region
      %s104 = ssub.s32 256, 256
      %105 = vsyncadd [#allocation6], %s104
      %s106 = sshll.u32 [#allocation7], 4
      %s107 = int_to_ptr.vmem [resolvable:$true] %s106
      %112 = dma.vmem_to_hbm [thread:$0]  %s107, 256, %s2, [#allocation6], 128, 128, 8
    $region13: #{tpu_custom_call.1} parent=1 // pred_fallthru
      _
    // Predicated region
    $region14: #{tpu_custom_call.1} parent=1 // pred_check
      _
    $region15: #{tpu_custom_call.1} parent=1 // pred_check_branch
      %114 = sbr.rel (0) target = $region17
    $region16: #{tpu_custom_call.1} parent=1 // pred_region
      %115 = dma.done [#allocation6], 256
    $region17: #{tpu_custom_call.1} parent=1 // pred_fallthru
      _
    %116 = vsyncpa [#allocation5], 1
    %117 = vsyncpa [#allocation6], 1

</llo_original>
